<compile_context>
chip_gen: v6e
topology: v6e:2x2x1
jax: 0.10.0
libtpu: 0.0.40
codegen_flags: <defaults>
</compile_context>

<pallas_src>
import functools

import jax
import jax.numpy as jnp
from jax.experimental import pallas as pl
from jax.experimental.pallas import tpu as pltpu


def fused_tcn_kernel(x_ref, w_ref, b_ref, out_ref, *, dilations, B, L, C):
    """Whole TCN stack for one batch tile (B samples, B*L rows, channels last).

    x_ref   : (B*L, C)            bf16 input rows (layer-0 channels padded to C)
    w_ref   : (2*layers*3C, 2C)   bf16 packed weights; per layer:
                rows [0:3C)  = [conv1 | conv3-in-centre-tap] fused weight
                rows [3C:6C) = [conv2 | zeros]
    b_ref   : (2*layers, 2C)      f32 packed biases; per layer:
                row 0 = [b1 | b3], row 1 = [b2 | 0]
    out_ref : (B*L, C)            bf16 output rows
    """
    BL = B * L
    RW = 3 * C                                    # weight rows per matmul (K=3)

    # Sample-local time index (B samples are concatenated along rows) -> the
    # per-sample boundary masks for the rolled taps.  Built once, reused by
    # every conv of every layer.
    t = jax.lax.broadcasted_iota(jnp.int32, (BL, C), 0) % L

    h = x_ref[...].astype(jnp.float32)            # (BL, C) running activation

    for li, d in enumerate(dilations):
        m_lo = t >= d                             # left tap h[t-d] in range
        m_hi = t < (L - d)                        # right tap h[t+d] in range

        def make_slab(v):
            # im2col for a K=3 dilated conv with padding == dilation:
            # [h[t-d] | h[t] | h[t+d]], out-of-sample rows zeroed.  Shifts are
            # whole-block sublane rotations (XLU) + VPU selects; rolls are kept
            # in f32 (sublane rotation of packed bf16 rows is layout-hairy) and
            # the slab is cast to bf16 once for the MXU.
            left = jnp.where(m_lo, pltpu.roll(v, shift=d, axis=0), 0.0)
            right = jnp.where(m_hi, pltpu.roll(v, shift=BL - d, axis=0), 0.0)
            return jnp.concatenate([left, v, right], axis=-1).astype(jnp.bfloat16)

        base = 2 * li * RW                        # 16-row aligned (RW = 96)
        w1r = w_ref[base:base + RW, :]            # (3C, 2C) conv1 + residual
        w2 = w_ref[base + RW:base + 2 * RW, :C]   # (3C, C)  conv2
        b1r = b_ref[2 * li:2 * li + 1, :]         # (1, 2C)  [b1 | b3]
        b2 = b_ref[2 * li + 1:2 * li + 2, :C]     # (1, C)

        # conv1 and the 1x1 residual conv fused into one MXU matmul (N=2C).
        y = jnp.dot(make_slab(h), w1r, preferred_element_type=jnp.float32) + b1r
        h1 = jnp.maximum(y[:, :C], 0.0)           # relu1 (dropout1: identity)
        res = y[:, C:]                            # conv3(h) + b3, no activation

        # conv2 -> relu2 (dropout2: identity) -> residual add -> final ReLU.
        h2 = jnp.dot(make_slab(h1), w2, preferred_element_type=jnp.float32) + b2
        h = jnp.maximum(jnp.maximum(h2, 0.0) + res, 0.0)

    # TODO(synk): training-mode dropout (pltpu.prng_*) not implemented.
    # TODO(synk): for production L, present a fully lane-dense output layout
    # (time-on-lanes or 4-rows-per-128-lane-row packing) instead of C=32 lanes.
    out_ref[...] = h.astype(out_ref.dtype)        # bf16 store: half the writeback


def _pick_batch_tile(N, L, min_rows=256, max_rows=16384):
    """Rows per grid step: fill the MXU M dim but stay inside the VMEM budget."""
    divisors = [d for d in range(1, N + 1) if N % d == 0]
    fitting = [d for d in divisors if d * L <= max_rows] or [1]
    B = max(fitting)
    # Split into >1 grid step (v7x megacore) only if each tile still feeds
    # >= min_rows rows to the MXU; tiny problems run as a single grid step.
    if B == N and N % 2 == 0 and (N // 2) * L >= min_rows:
        B = N // 2
    if (B * L) % 16:                              # bf16 packs rows in 16s
        B = N
    return B


def tcn_stack(x_ncl, params_list, kernel_size):
    """TCNStack forward. x_ncl: (N, Feature_num, Seq_len) -> (N, n_filter, Seq_len)."""
    N, C_in0, L = x_ncl.shape
    layer_num = len(params_list)
    C = params_list[0][0].shape[-1]               # n_filter
    dilations = tuple(2 ** i for i in range(layer_num))

    # padding == dilation only preserves the sequence length for kernel_size=3,
    # which the residual add inside TemporalBlock requires (matches the spec).
    assert kernel_size == 3, "TemporalBlock with padding=dilation needs kernel_size=3"
    assert C_in0 <= C, "layer-0 input channels are zero-padded up to n_filter"
    assert (N * L) % 16 == 0, "N * Seq_len must be a multiple of 16 (bf16 rows)"

    B = _pick_batch_tile(N, L)
    G = N // B
    BL = B * L
    RW = 3 * C

    # NCL -> channels-last rows; pad layer-0 channels to C so every layer shares
    # one channel width; DMA the input as bf16 (it is only a bf16 MXU operand).
    x_rows = jnp.transpose(x_ncl, (0, 2, 1)).reshape(N * L, C_in0)
    x_rows = jnp.pad(x_rows, ((0, 0), (0, C - C_in0))).astype(jnp.bfloat16)

    # Pack ALL weights into one bf16 slab and ALL biases into one f32 array.
    w_blocks, b_rows = [], []
    for (w1, b1, w2, b2, w3, b3) in params_list:
        c_in = w3.shape[0]
        if c_in < C:                              # zero-pad layer-0 input channels
            w1 = jnp.pad(w1.reshape(kernel_size, c_in, C),
                         ((0, 0), (0, C - c_in), (0, 0))).reshape(RW, C)
            w3 = jnp.pad(w3, ((0, C - c_in), (0, 0)))
        # Fuse conv1 + 1x1 residual: w3 lives in the centre-tap rows of the
        # second half of the columns (the centre tap of the slab is h itself).
        w3_full = jnp.zeros((RW, C), w3.dtype).at[C:2 * C, :].set(w3)
        w_blocks.append(jnp.concatenate([w1, w3_full], axis=1))               # (3C, 2C)
        w_blocks.append(jnp.concatenate([w2, jnp.zeros((RW, C), w2.dtype)], axis=1))
        b_rows.append(jnp.concatenate([b1, b3], axis=1))                      # (1, 2C)
        b_rows.append(jnp.concatenate([b2, jnp.zeros_like(b2)], axis=1))
    w_all = jnp.concatenate(w_blocks, axis=0).astype(jnp.bfloat16)            # (2*layers*3C, 2C)
    b_all = jnp.concatenate(b_rows, axis=0).astype(jnp.float32)               # (2*layers, 2C)

    # Explicit VMEM budget (v7x: 64 MiB physical / 32 MiB default scoped).
    bytes_per_row = (2 * C * 2) * 2 + 6 * C * 4 + 2 * (3 * C) * 2
    vmem_limit = int(min(48 * 1024 * 1024,
                         max(32 * 1024 * 1024,
                             2 * (BL * bytes_per_row
                                  + w_all.size * 2 + b_all.size * 4))))

    kern = functools.partial(fused_tcn_kernel, dilations=dilations, B=B, L=L, C=C)
    resident = lambda g: (0, 0)                   # parameter blocks stay in VMEM

    out_rows = pl.pallas_call(
        kern,
        out_shape=jax.ShapeDtypeStruct((N * L, C), jnp.bfloat16),
        grid=(G,),
        in_specs=[pl.BlockSpec((BL, C), lambda g: (g, 0)),
                  pl.BlockSpec(w_all.shape, resident),
                  pl.BlockSpec(b_all.shape, resident)],
        out_specs=pl.BlockSpec((BL, C), lambda g: (g, 0)),
        compiler_params=pltpu.CompilerParams(
            dimension_semantics=("parallel",) if G > 1 else ("arbitrary",),
            vmem_limit_bytes=vmem_limit),
    )(x_rows, w_all, b_all)

    out = jnp.transpose(out_rows.reshape(N, L, C), (0, 2, 1))
    return out.astype(jnp.float32)


def make_block_params(key, c_in, c_out, k_size):
    """Deterministic params matching TemporalBlock.__init__ / init_weights().

    Returns f32 params in the kernel's natural layout:
      w1: (K*c_in,  c_out)  conv1 weight, tap-major rows (im2col layout)
      w2: (K*c_out, c_out)  conv2 weight
      w3: (c_in, c_out)     1x1 residual conv weight
      b1, b2, b3: (1, c_out)
    """
    keys = jax.random.split(key, 6)

    def weight_norm_identity(v):
        # w = g * v / ||v|| per output channel with g initialised to ||v||, so
        # the effective weight at init equals v (matches PyTorch's behaviour).
        # TODO(synk): for a trained checkpoint, apply the stored g instead.
        norm = jnp.sqrt(jnp.sum(v * v, axis=(1, 2), keepdims=True))
        return norm * v / norm

    v1 = 0.01 * jax.random.normal(keys[0], (c_out, c_in, k_size), jnp.float32)
    v2 = 0.01 * jax.random.normal(keys[1], (c_out, c_out, k_size), jnp.float32)
    v3 = 0.01 * jax.random.normal(keys[2], (c_out, c_in, 1), jnp.float32)
    w1 = weight_norm_identity(v1)
    w2 = weight_norm_identity(v2)
    w3 = weight_norm_identity(v3)

    # (C_out, C_in, K) -> (K, C_in, C_out) -> (K*C_in, C_out); rows ordered
    # [tap0: ch0..C_in-1 | tap1 | tap2], matching the im2col slab.
    w1 = jnp.transpose(w1, (2, 1, 0)).reshape(k_size * c_in, c_out)
    w2 = jnp.transpose(w2, (2, 1, 0)).reshape(k_size * c_out, c_out)
    w3 = jnp.transpose(w3[:, :, 0], (1, 0))

    b1 = 0.05 * jax.random.normal(keys[3], (1, c_out), jnp.float32)
    b2 = 0.05 * jax.random.normal(keys[4], (1, c_out), jnp.float32)
    b3 = 0.05 * jax.random.normal(keys[5], (1, c_out), jnp.float32)
    return (w1, b1, w2, b2, w3, b3)


def tcn_stack_reference(x_ncl, params_list, kernel_size):
    """Pure-JAX f32 (HIGHEST precision) reference of the same forward pass."""
    hi = jax.lax.Precision.HIGHEST
    x = jnp.transpose(x_ncl, (0, 2, 1))                      # (N, L, C)
    L = x.shape[1]
    for li, (w1, b1, w2, b2, w3, b3) in enumerate(params_list):
        d = 2 ** li

        def conv(h, w, b):
            hp = jnp.pad(h, ((0, 0), (d, d), (0, 0)))
            slab = jnp.concatenate(
                [hp[:, k * d:k * d + L, :] for k in range(kernel_size)], axis=-1)
            return jnp.einsum("nlc,co->nlo", slab, w, precision=hi) + b

        res = jnp.einsum("nlc,co->nlo", x, w3, precision=hi) + b3
        h1 = jax.nn.relu(conv(x, w1, b1))
        h2 = jax.nn.relu(conv(h1, w2, b2))
        x = jax.nn.relu(h2 + res)
    return jnp.transpose(x, (0, 2, 1))


if __name__ == "__main__":
    # TCNStack(layer_num=3, n_input=4, n_filter=32, kernel_size=3, dropout=0.1)
    layer_num, n_input, n_filter, kernel_size = 3, 4, 32, 3
    N, L = 2, 16

    key = jax.random.PRNGKey(0)
    kx, kp = jax.random.split(key)
    x = jax.random.normal(kx, (N, n_input, L), jnp.float32)  # (N, Feature, Seq)

    pkeys = jax.random.split(kp, layer_num)
    params_list = []
    for i in range(layer_num):
        cin = n_input if i == 0 else n_filter
        params_list.append(make_block_params(pkeys[i], cin, n_filter, kernel_size))

    out = tcn_stack(x, params_list, kernel_size)
    out = jax.block_until_ready(out)
    assert out.shape == (N, n_filter, L), out.shape
    assert out.dtype == jnp.float32

    ref = tcn_stack_reference(x, params_list, kernel_size)
    scale = float(jnp.max(jnp.abs(ref)))
    rel_err = float(jnp.max(jnp.abs(out - ref))) / (scale + 1e-6)
    assert rel_err < 2e-2, f"kernel/reference mismatch: scale-relative err = {rel_err}"
    print("KERNEL_OK")
</pallas_src>

<mosaic_0001>
module attributes {stable_mosaic.version = 11 : i64} {
  func.func @fused_tcn_kernel(%arg0: i32, %arg1: memref<32x32xbf16, #tpu.memory_space<vmem>>, %arg2: memref<576x64xbf16, #tpu.memory_space<vmem>>, %arg3: memref<6x64xf32, #tpu.memory_space<vmem>>, %arg4: memref<32x32xbf16, #tpu.memory_space<vmem>>) attributes {dimension_semantics = [#tpu.dimension_semantics<arbitrary>], iteration_bounds = array<i64: 1>, scalar_prefetch = 0 : i64, scratch_operands = 0 : i64, tpu.core_type = #tpu.core_type<tc>, window_params = [{transform_indices = @transform_0, window_bounds = array<i64: 32, 32>}, {pipeline_mode = #tpu.pipeline_mode<synchronous>, transform_indices = @transform_1, window_bounds = array<i64: 576, 64>}, {pipeline_mode = #tpu.pipeline_mode<synchronous>, transform_indices = @transform_2, window_bounds = array<i64: 6, 64>}, {transform_indices = @transform_3, window_bounds = array<i64: 32, 32>}]} {
    %0 = tpu.iota {dimensions = array<i32: 0>} : vector<32x32xi32>
    %c16_i32 = arith.constant 16 : i32
    %c0_i32 = arith.constant 0 : i32
    %1 = arith.cmpi eq, %c16_i32, %c0_i32 : i32
    %c1_i32 = arith.constant 1 : i32
    %2 = arith.select %1, %c1_i32, %c16_i32 : i32
    %3 = vector.broadcast %2 : i32 to vector<32x32xi32>
    %4 = arith.remsi %0, %3 : vector<32x32xi32>
    %c0_i32_0 = arith.constant 0 : i32
    %5 = vector.broadcast %c0_i32_0 : i32 to vector<32x32xi32>
    %6 = arith.cmpi ne, %4, %5 : vector<32x32xi32>
    %c0_i32_1 = arith.constant 0 : i32
    %7 = vector.broadcast %c0_i32_1 : i32 to vector<32x32xi32>
    %8 = arith.cmpi slt, %4, %7 : vector<32x32xi32>
    %c0_i32_2 = arith.constant 0 : i32
    %9 = arith.cmpi slt, %2, %c0_i32_2 : i32
    %10 = vector.broadcast %9 : i1 to vector<32x32xi1>
    %11 = vector.broadcast %10 : vector<32x32xi1> to vector<32x32xi1>
    %12 = arith.xori %8, %11 : vector<32x32xi1>
    %13 = arith.andi %12, %6 : vector<32x32xi1>
    %14 = vector.broadcast %2 : i32 to vector<32x32xi32>
    %15 = arith.addi %4, %14 : vector<32x32xi32>
    %16 = arith.select %13, %15, %4 : vector<32x32xi1>, vector<32x32xi32>
    %c0 = arith.constant 0 : index
    %c0_3 = arith.constant 0 : index
    %17 = vector.load %arg1[%c0, %c0_3] : memref<32x32xbf16, #tpu.memory_space<vmem>>, vector<32x32xbf16>
    %18 = arith.extf %17 : vector<32x32xbf16> to vector<32x32xf32>
    %c1_i32_4 = arith.constant 1 : i32
    %19 = vector.broadcast %c1_i32_4 : i32 to vector<32x32xi32>
    %20 = arith.cmpi sge, %16, %19 : vector<32x32xi32>
    %c15_i32 = arith.constant 15 : i32
    %21 = vector.broadcast %c15_i32 : i32 to vector<32x32xi32>
    %22 = arith.cmpi slt, %16, %21 : vector<32x32xi32>
    %c0_5 = arith.constant 0 : index
    %c0_6 = arith.constant 0 : index
    %23 = vector.load %arg2[%c0_5, %c0_6] : memref<576x64xbf16, #tpu.memory_space<vmem>>, vector<96x64xbf16>
    %c96 = arith.constant 96 : index
    %c0_7 = arith.constant 0 : index
    %24 = vector.load %arg2[%c96, %c0_7] : memref<576x64xbf16, #tpu.memory_space<vmem>>, vector<96x32xbf16>
    %c0_8 = arith.constant 0 : index
    %c0_9 = arith.constant 0 : index
    %25 = vector.load %arg3[%c0_8, %c0_9] : memref<6x64xf32, #tpu.memory_space<vmem>>, vector<1x64xf32>
    %c1 = arith.constant 1 : index
    %c0_10 = arith.constant 0 : index
    %26 = vector.load %arg3[%c1, %c0_10] : memref<6x64xf32, #tpu.memory_space<vmem>>, vector<1x32xf32>
    %c1_i32_11 = arith.constant 1 : i32
    %27 = tpu.dynamic_rotate %18 by %c1_i32_11 dim 0 : vector<32x32xf32>, i32 -> vector<32x32xf32>
    %cst = arith.constant 0.000000e+00 : f32
    %28 = vector.broadcast %cst : f32 to vector<32x32xf32>
    %29 = arith.select %20, %27, %28 : vector<32x32xi1>, vector<32x32xf32>
    %c31_i32 = arith.constant 31 : i32
    %30 = tpu.dynamic_rotate %18 by %c31_i32 dim 0 : vector<32x32xf32>, i32 -> vector<32x32xf32>
    %cst_12 = arith.constant 0.000000e+00 : f32
    %31 = vector.broadcast %cst_12 : f32 to vector<32x32xf32>
    %32 = arith.select %22, %30, %31 : vector<32x32xi1>, vector<32x32xf32>
    %33 = tpu.concatenate %29, %18, %32 in 1 : vector<32x32xf32>, vector<32x32xf32>, vector<32x32xf32> -> vector<32x96xf32>
    %34 = arith.truncf %33 : vector<32x96xf32> to vector<32x96xbf16>
    %cst_13 = arith.constant dense<0.000000e+00> : vector<32x64xf32>
    %35 = tpu.matmul %34, %23, %cst_13 {dimension_numbers = #tpu.dot_dimension_numbers<[1], [0], [0], [1], [0, 0, 1, 1], [], []>} : vector<32x96xbf16>, vector<96x64xbf16>, vector<32x64xf32> -> vector<32x64xf32>
    %36 = vector.broadcast %25 : vector<1x64xf32> to vector<32x64xf32>
    %37 = arith.addf %35, %36 : vector<32x64xf32>
    %38 = vector.extract_strided_slice %37 {offsets = [0, 0], sizes = [32, 32], strides = [1, 1]} : vector<32x64xf32> to vector<32x32xf32>
    %cst_14 = arith.constant 0.000000e+00 : f32
    %39 = vector.broadcast %cst_14 : f32 to vector<32x32xf32>
    %40 = arith.maximumf %38, %39 : vector<32x32xf32>
    %41 = vector.extract_strided_slice %37 {offsets = [0, 32], sizes = [32, 32], strides = [1, 1]} : vector<32x64xf32> to vector<32x32xf32>
    %c1_i32_15 = arith.constant 1 : i32
    %42 = tpu.dynamic_rotate %40 by %c1_i32_15 dim 0 : vector<32x32xf32>, i32 -> vector<32x32xf32>
    %cst_16 = arith.constant 0.000000e+00 : f32
    %43 = vector.broadcast %cst_16 : f32 to vector<32x32xf32>
    %44 = arith.select %20, %42, %43 : vector<32x32xi1>, vector<32x32xf32>
    %c31_i32_17 = arith.constant 31 : i32
    %45 = tpu.dynamic_rotate %40 by %c31_i32_17 dim 0 : vector<32x32xf32>, i32 -> vector<32x32xf32>
    %cst_18 = arith.constant 0.000000e+00 : f32
    %46 = vector.broadcast %cst_18 : f32 to vector<32x32xf32>
    %47 = arith.select %22, %45, %46 : vector<32x32xi1>, vector<32x32xf32>
    %48 = tpu.concatenate %44, %40, %47 in 1 : vector<32x32xf32>, vector<32x32xf32>, vector<32x32xf32> -> vector<32x96xf32>
    %49 = arith.truncf %48 : vector<32x96xf32> to vector<32x96xbf16>
    %cst_19 = arith.constant dense<0.000000e+00> : vector<32x32xf32>
    %50 = tpu.matmul %49, %24, %cst_19 {dimension_numbers = #tpu.dot_dimension_numbers<[1], [0], [0], [1], [0, 0, 1, 1], [], []>} : vector<32x96xbf16>, vector<96x32xbf16>, vector<32x32xf32> -> vector<32x32xf32>
    %51 = vector.broadcast %26 : vector<1x32xf32> to vector<32x32xf32>
    %52 = arith.addf %50, %51 : vector<32x32xf32>
    %cst_20 = arith.constant 0.000000e+00 : f32
    %53 = vector.broadcast %cst_20 : f32 to vector<32x32xf32>
    %54 = arith.maximumf %52, %53 : vector<32x32xf32>
    %55 = arith.addf %54, %41 : vector<32x32xf32>
    %cst_21 = arith.constant 0.000000e+00 : f32
    %56 = vector.broadcast %cst_21 : f32 to vector<32x32xf32>
    %57 = arith.maximumf %55, %56 : vector<32x32xf32>
    %c2_i32 = arith.constant 2 : i32
    %58 = vector.broadcast %c2_i32 : i32 to vector<32x32xi32>
    %59 = arith.cmpi sge, %16, %58 : vector<32x32xi32>
    %c14_i32 = arith.constant 14 : i32
    %60 = vector.broadcast %c14_i32 : i32 to vector<32x32xi32>
    %61 = arith.cmpi slt, %16, %60 : vector<32x32xi32>
    %c192 = arith.constant 192 : index
    %c0_22 = arith.constant 0 : index
    %62 = vector.load %arg2[%c192, %c0_22] : memref<576x64xbf16, #tpu.memory_space<vmem>>, vector<96x64xbf16>
    %c288 = arith.constant 288 : index
    %c0_23 = arith.constant 0 : index
    %63 = vector.load %arg2[%c288, %c0_23] : memref<576x64xbf16, #tpu.memory_space<vmem>>, vector<96x32xbf16>
    %c2 = arith.constant 2 : index
    %c0_24 = arith.constant 0 : index
    %64 = vector.load %arg3[%c2, %c0_24] : memref<6x64xf32, #tpu.memory_space<vmem>>, vector<1x64xf32>
    %c3 = arith.constant 3 : index
    %c0_25 = arith.constant 0 : index
    %65 = vector.load %arg3[%c3, %c0_25] : memref<6x64xf32, #tpu.memory_space<vmem>>, vector<1x32xf32>
    %c2_i32_26 = arith.constant 2 : i32
    %66 = tpu.dynamic_rotate %57 by %c2_i32_26 dim 0 : vector<32x32xf32>, i32 -> vector<32x32xf32>
    %cst_27 = arith.constant 0.000000e+00 : f32
    %67 = vector.broadcast %cst_27 : f32 to vector<32x32xf32>
    %68 = arith.select %59, %66, %67 : vector<32x32xi1>, vector<32x32xf32>
    %c30_i32 = arith.constant 30 : i32
    %69 = tpu.dynamic_rotate %57 by %c30_i32 dim 0 : vector<32x32xf32>, i32 -> vector<32x32xf32>
    %cst_28 = arith.constant 0.000000e+00 : f32
    %70 = vector.broadcast %cst_28 : f32 to vector<32x32xf32>
    %71 = arith.select %61, %69, %70 : vector<32x32xi1>, vector<32x32xf32>
    %72 = tpu.concatenate %68, %57, %71 in 1 : vector<32x32xf32>, vector<32x32xf32>, vector<32x32xf32> -> vector<32x96xf32>
    %73 = arith.truncf %72 : vector<32x96xf32> to vector<32x96xbf16>
    %cst_29 = arith.constant dense<0.000000e+00> : vector<32x64xf32>
    %74 = tpu.matmul %73, %62, %cst_29 {dimension_numbers = #tpu.dot_dimension_numbers<[1], [0], [0], [1], [0, 0, 1, 1], [], []>} : vector<32x96xbf16>, vector<96x64xbf16>, vector<32x64xf32> -> vector<32x64xf32>
    %75 = vector.broadcast %64 : vector<1x64xf32> to vector<32x64xf32>
    %76 = arith.addf %74, %75 : vector<32x64xf32>
    %77 = vector.extract_strided_slice %76 {offsets = [0, 0], sizes = [32, 32], strides = [1, 1]} : vector<32x64xf32> to vector<32x32xf32>
    %cst_30 = arith.constant 0.000000e+00 : f32
    %78 = vector.broadcast %cst_30 : f32 to vector<32x32xf32>
    %79 = arith.maximumf %77, %78 : vector<32x32xf32>
    %80 = vector.extract_strided_slice %76 {offsets = [0, 32], sizes = [32, 32], strides = [1, 1]} : vector<32x64xf32> to vector<32x32xf32>
    %c2_i32_31 = arith.constant 2 : i32
    %81 = tpu.dynamic_rotate %79 by %c2_i32_31 dim 0 : vector<32x32xf32>, i32 -> vector<32x32xf32>
    %cst_32 = arith.constant 0.000000e+00 : f32
    %82 = vector.broadcast %cst_32 : f32 to vector<32x32xf32>
    %83 = arith.select %59, %81, %82 : vector<32x32xi1>, vector<32x32xf32>
    %c30_i32_33 = arith.constant 30 : i32
    %84 = tpu.dynamic_rotate %79 by %c30_i32_33 dim 0 : vector<32x32xf32>, i32 -> vector<32x32xf32>
    %cst_34 = arith.constant 0.000000e+00 : f32
    %85 = vector.broadcast %cst_34 : f32 to vector<32x32xf32>
    %86 = arith.select %61, %84, %85 : vector<32x32xi1>, vector<32x32xf32>
    %87 = tpu.concatenate %83, %79, %86 in 1 : vector<32x32xf32>, vector<32x32xf32>, vector<32x32xf32> -> vector<32x96xf32>
    %88 = arith.truncf %87 : vector<32x96xf32> to vector<32x96xbf16>
    %cst_35 = arith.constant dense<0.000000e+00> : vector<32x32xf32>
    %89 = tpu.matmul %88, %63, %cst_35 {dimension_numbers = #tpu.dot_dimension_numbers<[1], [0], [0], [1], [0, 0, 1, 1], [], []>} : vector<32x96xbf16>, vector<96x32xbf16>, vector<32x32xf32> -> vector<32x32xf32>
    %90 = vector.broadcast %65 : vector<1x32xf32> to vector<32x32xf32>
    %91 = arith.addf %89, %90 : vector<32x32xf32>
    %cst_36 = arith.constant 0.000000e+00 : f32
    %92 = vector.broadcast %cst_36 : f32 to vector<32x32xf32>
    %93 = arith.maximumf %91, %92 : vector<32x32xf32>
    %94 = arith.addf %93, %80 : vector<32x32xf32>
    %cst_37 = arith.constant 0.000000e+00 : f32
    %95 = vector.broadcast %cst_37 : f32 to vector<32x32xf32>
    %96 = arith.maximumf %94, %95 : vector<32x32xf32>
    %c4_i32 = arith.constant 4 : i32
    %97 = vector.broadcast %c4_i32 : i32 to vector<32x32xi32>
    %98 = arith.cmpi sge, %16, %97 : vector<32x32xi32>
    %c12_i32 = arith.constant 12 : i32
    %99 = vector.broadcast %c12_i32 : i32 to vector<32x32xi32>
    %100 = arith.cmpi slt, %16, %99 : vector<32x32xi32>
    %c384 = arith.constant 384 : index
    %c0_38 = arith.constant 0 : index
    %101 = vector.load %arg2[%c384, %c0_38] : memref<576x64xbf16, #tpu.memory_space<vmem>>, vector<96x64xbf16>
    %c480 = arith.constant 480 : index
    %c0_39 = arith.constant 0 : index
    %102 = vector.load %arg2[%c480, %c0_39] : memref<576x64xbf16, #tpu.memory_space<vmem>>, vector<96x32xbf16>
    %c4 = arith.constant 4 : index
    %c0_40 = arith.constant 0 : index
    %103 = vector.load %arg3[%c4, %c0_40] : memref<6x64xf32, #tpu.memory_space<vmem>>, vector<1x64xf32>
    %c5 = arith.constant 5 : index
    %c0_41 = arith.constant 0 : index
    %104 = vector.load %arg3[%c5, %c0_41] : memref<6x64xf32, #tpu.memory_space<vmem>>, vector<1x32xf32>
    %c4_i32_42 = arith.constant 4 : i32
    %105 = tpu.dynamic_rotate %96 by %c4_i32_42 dim 0 : vector<32x32xf32>, i32 -> vector<32x32xf32>
    %cst_43 = arith.constant 0.000000e+00 : f32
    %106 = vector.broadcast %cst_43 : f32 to vector<32x32xf32>
    %107 = arith.select %98, %105, %106 : vector<32x32xi1>, vector<32x32xf32>
    %c28_i32 = arith.constant 28 : i32
    %108 = tpu.dynamic_rotate %96 by %c28_i32 dim 0 : vector<32x32xf32>, i32 -> vector<32x32xf32>
    %cst_44 = arith.constant 0.000000e+00 : f32
    %109 = vector.broadcast %cst_44 : f32 to vector<32x32xf32>
    %110 = arith.select %100, %108, %109 : vector<32x32xi1>, vector<32x32xf32>
    %111 = tpu.concatenate %107, %96, %110 in 1 : vector<32x32xf32>, vector<32x32xf32>, vector<32x32xf32> -> vector<32x96xf32>
    %112 = arith.truncf %111 : vector<32x96xf32> to vector<32x96xbf16>
    %cst_45 = arith.constant dense<0.000000e+00> : vector<32x64xf32>
    %113 = tpu.matmul %112, %101, %cst_45 {dimension_numbers = #tpu.dot_dimension_numbers<[1], [0], [0], [1], [0, 0, 1, 1], [], []>} : vector<32x96xbf16>, vector<96x64xbf16>, vector<32x64xf32> -> vector<32x64xf32>
    %114 = vector.broadcast %103 : vector<1x64xf32> to vector<32x64xf32>
    %115 = arith.addf %113, %114 : vector<32x64xf32>
    %116 = vector.extract_strided_slice %115 {offsets = [0, 0], sizes = [32, 32], strides = [1, 1]} : vector<32x64xf32> to vector<32x32xf32>
    %cst_46 = arith.constant 0.000000e+00 : f32
    %117 = vector.broadcast %cst_46 : f32 to vector<32x32xf32>
    %118 = arith.maximumf %116, %117 : vector<32x32xf32>
    %119 = vector.extract_strided_slice %115 {offsets = [0, 32], sizes = [32, 32], strides = [1, 1]} : vector<32x64xf32> to vector<32x32xf32>
    %c4_i32_47 = arith.constant 4 : i32
    %120 = tpu.dynamic_rotate %118 by %c4_i32_47 dim 0 : vector<32x32xf32>, i32 -> vector<32x32xf32>
    %cst_48 = arith.constant 0.000000e+00 : f32
    %121 = vector.broadcast %cst_48 : f32 to vector<32x32xf32>
    %122 = arith.select %98, %120, %121 : vector<32x32xi1>, vector<32x32xf32>
    %c28_i32_49 = arith.constant 28 : i32
    %123 = tpu.dynamic_rotate %118 by %c28_i32_49 dim 0 : vector<32x32xf32>, i32 -> vector<32x32xf32>
    %cst_50 = arith.constant 0.000000e+00 : f32
    %124 = vector.broadcast %cst_50 : f32 to vector<32x32xf32>
    %125 = arith.select %100, %123, %124 : vector<32x32xi1>, vector<32x32xf32>
    %126 = tpu.concatenate %122, %118, %125 in 1 : vector<32x32xf32>, vector<32x32xf32>, vector<32x32xf32> -> vector<32x96xf32>
    %127 = arith.truncf %126 : vector<32x96xf32> to vector<32x96xbf16>
    %cst_51 = arith.constant dense<0.000000e+00> : vector<32x32xf32>
    %128 = tpu.matmul %127, %102, %cst_51 {dimension_numbers = #tpu.dot_dimension_numbers<[1], [0], [0], [1], [0, 0, 1, 1], [], []>} : vector<32x96xbf16>, vector<96x32xbf16>, vector<32x32xf32> -> vector<32x32xf32>
    %129 = vector.broadcast %104 : vector<1x32xf32> to vector<32x32xf32>
    %130 = arith.addf %128, %129 : vector<32x32xf32>
    %cst_52 = arith.constant 0.000000e+00 : f32
    %131 = vector.broadcast %cst_52 : f32 to vector<32x32xf32>
    %132 = arith.maximumf %130, %131 : vector<32x32xf32>
    %133 = arith.addf %132, %119 : vector<32x32xf32>
    %cst_53 = arith.constant 0.000000e+00 : f32
    %134 = vector.broadcast %cst_53 : f32 to vector<32x32xf32>
    %135 = arith.maximumf %133, %134 : vector<32x32xf32>
    %136 = arith.truncf %135 : vector<32x32xf32> to vector<32x32xbf16>
    %c0_54 = arith.constant 0 : index
    %c0_55 = arith.constant 0 : index
    %137 = vector.load %arg4[%c0_54, %c0_55] : memref<32x32xbf16, #tpu.memory_space<vmem>>, vector<32x32xbf16>
    tpu.vector_store %arg4[%c0_54, %c0_55], %136 {strides = array<i32>} : memref<32x32xbf16, #tpu.memory_space<vmem>>, vector<32x32xbf16>,
    return
  }
  func.func @transform_0(%arg0: i32) -> (i32, i32) {
    %c0_i32 = arith.constant 0 : i32
    %c0_i32_0 = arith.constant 0 : i32
    return %arg0, %c0_i32 : i32, i32
  }
  func.func @transform_1(%arg0: i32) -> (i32, i32) {
    %c0_i32 = arith.constant 0 : i32
    %c0_i32_0 = arith.constant 0 : i32
    %c0_i32_1 = arith.constant 0 : i32
    return %c0_i32, %c0_i32_0 : i32, i32
  }
  func.func @transform_2(%arg0: i32) -> (i32, i32) {
    %c0_i32 = arith.constant 0 : i32
    %c0_i32_0 = arith.constant 0 : i32
    %c0_i32_1 = arith.constant 0 : i32
    return %c0_i32, %c0_i32_0 : i32, i32
  }
  func.func @transform_3(%arg0: i32) -> (i32, i32) {
    %c0_i32 = arith.constant 0 : i32
    %c0_i32_0 = arith.constant 0 : i32
    return %arg0, %c0_i32 : i32, i32
  }
}

</mosaic_0001>

<llo_original>
// kernel: tpu_custom_call.1
$region0: #{tpu_custom_call.1}
  #allocation0 [shape = 'u32[]', space=smem, size = 0x4, offset = 0x4, fixed_abs, tag = 'smem constant byte address 0x4 - core index']
  #allocation1 [shape = 'u32[144,128]{1,0:T(1,128)}', space=vmem, size = 0x12000, scoped, tag = 'internal scratch']
  %s0 = inlined_call_operand.vmem [shape: bf16[32,32], index: 0, kind: input, shape index: {}]
  %s1 = inlined_call_operand.vmem [shape: bf16[576,64], index: 1, kind: input, shape index: {}]
  %s2 = inlined_call_operand.vmem [shape: f32[6,64], index: 2, kind: input, shape index: {}]
  %s3 = inlined_call_operand.hbm [shape: bf16[32,32], index: 3, kind: output, shape index: {}]
  %s4 = sld [smem:[#allocation0]]
  $region22: #{tpu_custom_call.1} parent=0
    _
  %s6 = ssub.s32 1, %s4
  %s7 = scalar_select 0, %s6, %s4
  $region1: #{tpu_custom_call.1} parent=0
    #allocation2 [shape = 'u8[8192]{0}', space=vmem, size = 0x2000, scoped, tag = 'output window, operand 0, single buffered']
    #allocation3 [shape = 's32[1]{0}', space=sflag, size = 0x4, scoped, tag = 'scoped memory for tpu_custom_call.1']
    %8 = vsyncpa [#allocation3], 0
    // Predicated region
    $region2: #{tpu_custom_call.1} parent=1 // pred_check
      _
    $region3: #{tpu_custom_call.1} parent=1 // pred_check_branch
      %10 = sbr.rel (0) target = $region5
    $region4: #{tpu_custom_call.1} parent=1 // pred_region
      _
    $region5: #{tpu_custom_call.1} parent=1 // pred_fallthru
      _
    // Predicated region
    $region6: #{tpu_custom_call.1} parent=1 // pred_check
      _
    $region7: #{tpu_custom_call.1} parent=1 // pred_check_branch
      %12 = sbr.rel (0) target = $region9
    $region8: #{tpu_custom_call.1} parent=1 // pred_region
      _
    $region9: #{tpu_custom_call.1} parent=1 // pred_fallthru
      _
    // Predicated region
    $region10: #{tpu_custom_call.1} parent=1 // pred_check
      _
    $region11: #{tpu_custom_call.1} parent=1 // pred_check_branch
      %14 = sbr.rel (0) target = $region13
    $region12: #{tpu_custom_call.1} parent=1 // pred_region
      _
    $region13: #{tpu_custom_call.1} parent=1 // pred_fallthru
      _
    %v16 = vlaneseq
    %v17 = vshrl.u32 %v16, 7
    %v18 = vadd.s32 %v17, 8
    %v19 = vadd.s32 %v17, 16
    %v20 = vadd.s32 %v17, 24
    %vm21 = vcmp.lt.s32.totalorder %v17, 0
    %v22 = vsub.s32 0, %v17
    %v23 = vsel %vm21, %v22, %v17
    %v24 = vshrl.u32 %v23, 4
    %v25 = vand.u32 %v23, 15
    %v26 = vsub.s32 0, %v25
    %v27 = vsel %vm21, %v26, %v25
    %vm28 = vcmp.lt.s32.totalorder %v18, 0
    %v29 = vsub.s32 0, %v18
    %v30 = vsel %vm28, %v29, %v18
    %v31 = vshrl.u32 %v30, 4
    %v32 = vand.u32 %v30, 15
    %v33 = vsub.s32 0, %v32
    %v34 = vsel %vm28, %v33, %v32
    %vm35 = vcmp.lt.s32.totalorder %v19, 0
    %v36 = vsub.s32 0, %v19
    %v37 = vsel %vm35, %v36, %v19
    %v38 = vshrl.u32 %v37, 4
    %v39 = vand.u32 %v37, 15
    %v40 = vsub.s32 0, %v39
    %v41 = vsel %vm35, %v40, %v39
    %vm42 = vcmp.lt.s32.totalorder %v20, 0
    %v43 = vsub.s32 0, %v20
    %v44 = vsel %vm42, %v43, %v20
    %v45 = vshrl.u32 %v44, 4
    %v46 = vand.u32 %v44, 15
    %v47 = vsub.s32 0, %v46
    %v48 = vsel %vm42, %v47, %v46
    %vm49 = vcmp.ne.s32.totalorder %v27, 0
    %vm50 = vcmp.ne.s32.totalorder %v34, 0
    %vm51 = vcmp.ne.s32.totalorder %v41, 0
    %vm52 = vcmp.ne.s32.totalorder %v48, 0
    %vm53 = vcmp.lt.s32.totalorder %v27, 0
    %vm54 = vcmp.lt.s32.totalorder %v34, 0
    %vm55 = vcmp.lt.s32.totalorder %v41, 0
    %vm56 = vcmp.lt.s32.totalorder %v48, 0
    %vm57 = vmand %vm53, %vm49
    %vm58 = vmand %vm54, %vm50
    %vm59 = vmand %vm55, %vm51
    %vm60 = vmand %vm56, %vm52
    %v61 = vadd.s32 %v27, 16
    %v62 = vadd.s32 %v34, 16
    %v63 = vadd.s32 %v41, 16
    %v64 = vadd.s32 %v48, 16
    %v65 = vsel %vm57, %v61, %v27
    %v66 = vsel %vm58, %v62, %v34
    %v67 = vsel %vm59, %v63, %v41
    %v68 = vsel %vm60, %v64, %v48
    %v69 = vld [vmem:[%s0] sm:$0xf]
    %v70 = vld [vmem:[%s0 + $0x4] sm:$0xf]
    %v71 = vld [vmem:[%s0 + $0x8] sm:$0xf]
    %v72 = vld [vmem:[%s0 + $0xc] sm:$0xf]
    %v73 = vunpack.c.l.bf16 %v69
    %v74 = vunpack.c.l.bf16 %v70
    %v75 = vunpack.c.l.bf16 %v71
    %v76 = vunpack.c.l.bf16 %v72
    %vm77 = vcmp.ge.s32.totalorder %v65, 1
    %vm78 = vcmp.ge.s32.totalorder %v66, 1
    %vm79 = vcmp.ge.s32.totalorder %v67, 1
    %vm80 = vcmp.ge.s32.totalorder %v68, 1
    %vm81 = vcmp.lt.s32.totalorder %v65, 15
    %vm82 = vcmp.lt.s32.totalorder %v66, 15
    %vm83 = vcmp.lt.s32.totalorder %v67, 15
    %vm84 = vcmp.lt.s32.totalorder %v68, 15
    %v85 = vld [vmem:[%s1] sm:$0xf]
    %v86 = vld [vmem:[%s1 + $0x4] sm:$0xf]
    %v87 = vld [vmem:[%s1 + $0x8] sm:$0xf]
    %v88 = vld [vmem:[%s1 + $0xc] sm:$0xf]
    %v89 = vld [vmem:[%s1 + $0x10] sm:$0xf]
    %v90 = vld [vmem:[%s1 + $0x14] sm:$0xf]
    %v91 = vld [vmem:[%s1 + $0x18] sm:$0xf]
    %v92 = vld [vmem:[%s1 + $0x1c] sm:$0xf]
    %v93 = vld [vmem:[%s1 + $0x20] sm:$0xf]
    %v94 = vld [vmem:[%s1 + $0x24] sm:$0xf]
    %v95 = vld [vmem:[%s1 + $0x28] sm:$0xf]
    %v96 = vld [vmem:[%s1 + $0x2c] sm:$0xf]
    %v97 = vld [vmem:[%s1 + $0x30] sm:$0xf]
    %v98 = vld [vmem:[%s1 + $0x34] sm:$0xf]
    %v99 = vld [vmem:[%s1 + $0x38] sm:$0xf]
    %v100 = vld [vmem:[%s1 + $0x3c] sm:$0xf]
    %v101 = vld [vmem:[%s1 + $0x40] sm:$0xf]
    %v102 = vld [vmem:[%s1 + $0x44] sm:$0xf]
    %v103 = vld [vmem:[%s1 + $0x48] sm:$0xf]
    %v104 = vld [vmem:[%s1 + $0x4c] sm:$0xf]
    %v105 = vld [vmem:[%s1 + $0x50] sm:$0xf]
    %v106 = vld [vmem:[%s1 + $0x54] sm:$0xf]
    %v107 = vld [vmem:[%s1 + $0x58] sm:$0xf]
    %v108 = vld [vmem:[%s1 + $0x5c] sm:$0xf]
    %v109 = vld [vmem:[%s2] sm:$0x1]
    %v110 = vld [vmem:[%s2 + $0x1] sm:$0x1]
    %v111 = vrot.slane %v73, 7
    %v112 = vrot.slane %v74, 7
    %v113 = vrot.slane %v75, 7
    %v114 = vrot.slane %v76, 7
    %vm115 = vcmp.lt.s32.totalorder %v17, 1
    %v116 = vsel %vm115, %v113, %v114
    %v117 = vsel %vm115, %v112, %v113
    %v118 = vsel %vm115, %v111, %v112
    %v119 = vsel %vm115, %v114, %v111
    %v120 = vsel %vm77, %v119, 0.0
    %v121 = vsel %vm78, %v118, 0.0
    %v122 = vsel %vm79, %v117, 0.0
    %v123 = vsel %vm80, %v116, 0.0
    %v124 = vrot.slane %v73, 1
    %v125 = vrot.slane %v74, 1
    %v126 = vrot.slane %v75, 1
    %v127 = vrot.slane %v76, 1
    %vm128 = vcmp.lt.s32.totalorder %v17, 7
    %v129 = vsel %vm128, %v126, %v127
    %v130 = vsel %vm128, %v125, %v126
    %v131 = vsel %vm128, %v124, %v125
    %v132 = vsel %vm128, %v127, %v124
    %v133 = vsel %vm81, %v131, 0.0
    %v134 = vsel %vm82, %v130, 0.0
    %v135 = vsel %vm83, %v129, 0.0
    %v136 = vsel %vm84, %v132, 0.0
    %141 = vrot.lane.b32.xlu0 %v73, 32
    %v142 = vpop.permute.xlu0 %141
    %143 = vrot.lane.b32.xlu0 %v74, 32
    %v144 = vpop.permute.xlu0 %143
    %145 = vrot.lane.b32.xlu0 %v75, 32
    %v146 = vpop.permute.xlu0 %145
    %147 = vrot.lane.b32.xlu0 %v76, 32
    %v148 = vpop.permute.xlu0 %147
    %157 = vrot.lane.b32.xlu0 %v133, 64
    %v158 = vpop.permute.xlu0 %157
    %159 = vrot.lane.b32.xlu0 %v134, 64
    %v160 = vpop.permute.xlu0 %159
    %161 = vrot.lane.b32.xlu0 %v135, 64
    %v162 = vpop.permute.xlu0 %161
    %163 = vrot.lane.b32.xlu0 %v136, 64
    %v164 = vpop.permute.xlu0 %163
    %vm169 = vcmask 261120
    %v170 = vsel %vm169, %v120, %v142
    %v171 = vsel %vm169, %v121, %v144
    %v172 = vsel %vm169, %v122, %v146
    %v173 = vsel %vm169, %v123, %v148
    %vm174 = vcmask 523264
    %v175 = vsel %vm174, %v170, %v158
    %v176 = vsel %vm174, %v171, %v160
    %v177 = vsel %vm174, %v172, %v162
    %v178 = vsel %vm174, %v173, %v164
    %v179 = vpack.c.bf16 %v176, %v175
    %v180 = vpack.c.bf16 %v178, %v177
    %v181 = vlaneseq
    %v182 = vshrl.u32 %v181, 7
    %v183 = vsub.s32 0, %v182
    %v184 = vrot.slane %v109, %v183
    %v197 = vunpack.c.l.b16 %v85
    %v198 = vunpack.c.l.b16 %v86
    %v199 = vunpack.c.l.b16 %v87
    %v200 = vunpack.c.l.b16 %v88
    %v201 = vunpack.c.l.b16 %v89
    %v202 = vunpack.c.l.b16 %v90
    %v203 = vunpack.c.l.b16 %v91
    %v204 = vunpack.c.l.b16 %v92
    %v205 = vunpack.c.l.b16 %v93
    %v206 = vunpack.c.l.b16 %v94
    %v207 = vunpack.c.l.b16 %v95
    %v208 = vunpack.c.l.b16 %v96
    %v209 = vpack.c.b16 %v198, %v197
    %v210 = vpack.c.b16 %v200, %v199
    %v211 = vpack.c.b16 %v202, %v201
    %v212 = vpack.c.b16 %v204, %v203
    %v213 = vpack.c.b16 %v206, %v205
    %v214 = vpack.c.b16 %v208, %v207
    %vm221 = vcmask 785408
    %v223 = vsel %vm221, %v179, 0
    %v226 = vsel %vm221, %v180, 0
    %228 = vmatprep.subr.bf16.mxu0 0
    %229 = vmatpush1.bf16.msra.mxu0 0
    %230 = vmatprep.subr.bf16.mxu0 0
    %231 = vmatpush1.bf16.msra.mxu0 0
    %232 = vmatprep.subr.bf16.mxu0 0
    %233 = vmatpush1.bf16.msra.mxu0 %v214
    %234 = vmatprep.subr.bf16.mxu0 0
    %235 = vmatpush1.bf16.msra.mxu0 %v213
    %236 = vmatprep.subr.bf16.mxu0 0
    %237 = vmatpush1.bf16.msra.mxu0 %v212
    %238 = vmatprep.subr.bf16.mxu0 0
    %239 = vmatpush1.bf16.msra.mxu0 %v211
    %240 = vmatprep.subr.bf16.mxu0 0
    %241 = vmatpush1.bf16.msra.mxu0 %v210
    %242 = vmatprep.subr.bf16.mxu0 0
    %243 = vmatpush1.bf16.msra.mxu0 %v209
    %244 = vmatprep.subr.bf16.mxu0 0
    %245 = vmatpush2.bf16.msra.mxu0 0
    %246 = vmatprep.subr.bf16.mxu0 0
    %247 = vmatpush2.bf16.msra.mxu0 0
    %248 = vmatprep.subr.bf16.mxu0 0
    %249 = vmatpush2.bf16.msra.mxu0 0
    %250 = vmatprep.subr.bf16.mxu0 0
    %251 = vmatpush2.bf16.msra.mxu0 0
    %252 = vmatprep.subr.bf16.mxu0 0
    %253 = vmatpush2.bf16.msra.mxu0 0
    %254 = vmatprep.subr.bf16.mxu0 0
    %255 = vmatpush2.bf16.msra.mxu0 0
    %256 = vmatprep.subr.bf16.mxu0 0
    %257 = vmatpush2.bf16.msra.mxu0 0
    %258 = vmatprep.subr.bf16.mxu0 0
    %259 = vmatpush2.bf16.msra.mxu0 0
    %260 = vmatprep.mubr.bf16.mxu0 0
    %261 = vmatmul.mubr.bf16.gmra.mxu0 %v223
    %v262 = vpop.f32.mrf.mxu0
    %v263 = vadd.f32 %v184, %v262
    %v264 = vpop.f32.mrf.mxu0
    %v265 = vpop.f32.mrf.mxu0
    %v266 = vadd.f32 %v184, %v265
    %v267 = vpop.f32.mrf.mxu0
    %268 = vmatprep.mubr.bf16.mxu0 0
    %269 = vmatmul.mubr.bf16.gmra.mxu0 %v226
    %v270 = vpop.f32.mrf.mxu0
    %v271 = vadd.f32 %v184, %v270
    %v272 = vpop.f32.mrf.mxu0
    %v273 = vpop.f32.mrf.mxu0
    %v274 = vadd.f32 %v184, %v273
    %v275 = vpop.f32.mrf.mxu0
    %276 = vdwg.mxu0
    %v277 = vmax.f32 %v263, 0.0
    %v278 = vmax.f32 %v266, 0.0
    %v279 = vmax.f32 %v271, 0.0
    %v280 = vmax.f32 %v274, 0.0
    %v281 = vrot.slane %v277, 7
    %v282 = vrot.slane %v278, 7
    %v283 = vrot.slane %v279, 7
    %v284 = vrot.slane %v280, 7
    %v285 = vsel %vm115, %v283, %v284
    %v286 = vsel %vm115, %v282, %v283
    %v287 = vsel %vm115, %v281, %v282
    %v288 = vsel %vm115, %v284, %v281
    %v289 = vsel %vm77, %v288, 0.0
    %v290 = vsel %vm78, %v287, 0.0
    %v291 = vsel %vm79, %v286, 0.0
    %v292 = vsel %vm80, %v285, 0.0
    %v293 = vrot.slane %v277, 1
    %v294 = vrot.slane %v278, 1
    %v295 = vrot.slane %v279, 1
    %v296 = vrot.slane %v280, 1
    %v297 = vsel %vm128, %v295, %v296
    %v298 = vsel %vm128, %v294, %v295
    %v299 = vsel %vm128, %v293, %v294
    %v300 = vsel %vm128, %v296, %v293
    %v301 = vsel %vm81, %v299, 0.0
    %v302 = vsel %vm82, %v298, 0.0
    %v303 = vsel %vm83, %v297, 0.0
    %v304 = vsel %vm84, %v300, 0.0
    %309 = vrot.lane.b32.xlu0 %v277, 32
    %v310 = vpop.permute.xlu0 %309
    %311 = vrot.lane.b32.xlu0 %v278, 32
    %v312 = vpop.permute.xlu0 %311
    %313 = vrot.lane.b32.xlu0 %v279, 32
    %v314 = vpop.permute.xlu0 %313
    %315 = vrot.lane.b32.xlu0 %v280, 32
    %v316 = vpop.permute.xlu0 %315
    %325 = vrot.lane.b32.xlu0 %v301, 64
    %v326 = vpop.permute.xlu0 %325
    %327 = vrot.lane.b32.xlu0 %v302, 64
    %v328 = vpop.permute.xlu0 %327
    %329 = vrot.lane.b32.xlu0 %v303, 64
    %v330 = vpop.permute.xlu0 %329
    %331 = vrot.lane.b32.xlu0 %v304, 64
    %v332 = vpop.permute.xlu0 %331
    %v337 = vsel %vm169, %v289, %v310
    %v338 = vsel %vm169, %v290, %v312
    %v339 = vsel %vm169, %v291, %v314
    %v340 = vsel %vm169, %v292, %v316
    %v341 = vsel %vm174, %v337, %v326
    %v342 = vsel %vm174, %v338, %v328
    %v343 = vsel %vm174, %v339, %v330
    %v344 = vsel %vm174, %v340, %v332
    %v345 = vpack.c.bf16 %v342, %v341
    %v346 = vpack.c.bf16 %v344, %v343
    %v347 = vlaneseq
    %v348 = vshrl.u32 %v347, 7
    %v349 = vsub.s32 0, %v348
    %v350 = vrot.slane %v110, %v349
    %v363 = vunpack.c.l.b16 %v97
    %v364 = vunpack.c.l.b16 %v98
    %v365 = vunpack.c.l.b16 %v99
    %v366 = vunpack.c.l.b16 %v100
    %v367 = vunpack.c.l.b16 %v101
    %v368 = vunpack.c.l.b16 %v102
    %v369 = vunpack.c.l.b16 %v103
    %v370 = vunpack.c.l.b16 %v104
    %v371 = vunpack.c.l.b16 %v105
    %v372 = vunpack.c.l.b16 %v106
    %v373 = vunpack.c.l.b16 %v107
    %v374 = vunpack.c.l.b16 %v108
    %v375 = vpack.c.b16 %v364, %v363
    %v376 = vpack.c.b16 %v366, %v365
    %v377 = vpack.c.b16 %v368, %v367
    %v378 = vpack.c.b16 %v370, %v369
    %v379 = vpack.c.b16 %v372, %v371
    %v380 = vpack.c.b16 %v374, %v373
    %v388 = vsel %vm221, %v345, 0
    %v391 = vsel %vm221, %v346, 0
    %393 = vmatprep.subr.bf16.mxu0 0
    %394 = vmatpush1.bf16.msra.mxu0 0
    %395 = vmatprep.subr.bf16.mxu0 0
    %396 = vmatpush1.bf16.msra.mxu0 0
    %397 = vmatprep.subr.bf16.mxu0 0
    %398 = vmatpush1.bf16.msra.mxu0 %v380
    %399 = vmatprep.subr.bf16.mxu0 0
    %400 = vmatpush1.bf16.msra.mxu0 %v379
    %401 = vmatprep.subr.bf16.mxu0 0
    %402 = vmatpush1.bf16.msra.mxu0 %v378
    %403 = vmatprep.subr.bf16.mxu0 0
    %404 = vmatpush1.bf16.msra.mxu0 %v377
    %405 = vmatprep.subr.bf16.mxu0 0
    %406 = vmatpush1.bf16.msra.mxu0 %v376
    %407 = vmatprep.subr.bf16.mxu0 0
    %408 = vmatpush1.bf16.msra.mxu0 %v375
    %409 = vmatprep.subr.bf16.mxu0 0
    %410 = vmatpush2.bf16.msra.mxu0 0
    %411 = vmatprep.subr.bf16.mxu0 0
    %412 = vmatpush2.bf16.msra.mxu0 0
    %413 = vmatprep.subr.bf16.mxu0 0
    %414 = vmatpush2.bf16.msra.mxu0 0
    %415 = vmatprep.subr.bf16.mxu0 0
    %416 = vmatpush2.bf16.msra.mxu0 0
    %417 = vmatprep.subr.bf16.mxu0 0
    %418 = vmatpush2.bf16.msra.mxu0 0
    %419 = vmatprep.subr.bf16.mxu0 0
    %420 = vmatpush2.bf16.msra.mxu0 0
    %421 = vmatprep.subr.bf16.mxu0 0
    %422 = vmatpush2.bf16.msra.mxu0 0
    %423 = vmatprep.subr.bf16.mxu0 0
    %424 = vmatpush2.bf16.msra.mxu0 0
    %425 = vmatprep.mubr.bf16.mxu0 0
    %426 = vmatmul.mubr.bf16.gmra.mxu0 %v388
    %v427 = vpop.f32.mrf.mxu0
    %v428 = vadd.f32 %v350, %v427
    %v429 = vpop.f32.mrf.mxu0
    %v430 = vpop.f32.mrf.mxu0
    %v431 = vadd.f32 %v350, %v430
    %v432 = vpop.f32.mrf.mxu0
    %433 = vmatprep.mubr.bf16.mxu0 0
    %434 = vmatmul.mubr.bf16.gmra.mxu0 %v391
    %v435 = vpop.f32.mrf.mxu0
    %v436 = vadd.f32 %v350, %v435
    %v437 = vpop.f32.mrf.mxu0
    %v438 = vpop.f32.mrf.mxu0
    %v439 = vadd.f32 %v350, %v438
    %v440 = vpop.f32.mrf.mxu0
    %441 = vdwg.mxu0
    %v442 = vmax.f32 %v428, 0.0
    %v443 = vmax.f32 %v431, 0.0
    %v444 = vmax.f32 %v436, 0.0
    %v445 = vmax.f32 %v439, 0.0
    %450 = vrot.lane.b32.xlu0 %v263, 96
    %v451 = vpop.permute.xlu0 %450
    %452 = vrot.lane.b32.xlu0 %v266, 96
    %v453 = vpop.permute.xlu0 %452
    %454 = vrot.lane.b32.xlu0 %v271, 96
    %v455 = vpop.permute.xlu0 %454
    %456 = vrot.lane.b32.xlu0 %v274, 96
    %v457 = vpop.permute.xlu0 %456
    %v462 = vadd.f32 %v442, %v451
    %v463 = vadd.f32 %v443, %v453
    %v464 = vadd.f32 %v444, %v455
    %v465 = vadd.f32 %v445, %v457
    %v466 = vmax.f32 %v462, 0.0
    %v467 = vmax.f32 %v463, 0.0
    %v468 = vmax.f32 %v464, 0.0
    %v469 = vmax.f32 %v465, 0.0
    %vm470 = vcmp.ge.s32.totalorder %v65, 2
    %vm471 = vcmp.ge.s32.totalorder %v66, 2
    %vm472 = vcmp.ge.s32.totalorder %v67, 2
    %vm473 = vcmp.ge.s32.totalorder %v68, 2
    %vm474 = vcmp.lt.s32.totalorder %v65, 14
    %vm475 = vcmp.lt.s32.totalorder %v66, 14
    %vm476 = vcmp.lt.s32.totalorder %v67, 14
    %vm477 = vcmp.lt.s32.totalorder %v68, 14
    %v478 = vld [vmem:[%s1 + $0x60] sm:$0xf]
    %v479 = vld [vmem:[%s1 + $0x64] sm:$0xf]
    %v480 = vld [vmem:[%s1 + $0x68] sm:$0xf]
    %v481 = vld [vmem:[%s1 + $0x6c] sm:$0xf]
    %v482 = vld [vmem:[%s1 + $0x70] sm:$0xf]
    %v483 = vld [vmem:[%s1 + $0x74] sm:$0xf]
    %v484 = vld [vmem:[%s1 + $0x78] sm:$0xf]
    %v485 = vld [vmem:[%s1 + $0x7c] sm:$0xf]
    %v486 = vld [vmem:[%s1 + $0x80] sm:$0xf]
    %v487 = vld [vmem:[%s1 + $0x84] sm:$0xf]
    %v488 = vld [vmem:[%s1 + $0x88] sm:$0xf]
    %v489 = vld [vmem:[%s1 + $0x8c] sm:$0xf]
    %v490 = vld [vmem:[%s1 + $0x90] sm:$0xf]
    %v491 = vld [vmem:[%s1 + $0x94] sm:$0xf]
    %v492 = vld [vmem:[%s1 + $0x98] sm:$0xf]
    %v493 = vld [vmem:[%s1 + $0x9c] sm:$0xf]
    %v494 = vld [vmem:[%s1 + $0xa0] sm:$0xf]
    %v495 = vld [vmem:[%s1 + $0xa4] sm:$0xf]
    %v496 = vld [vmem:[%s1 + $0xa8] sm:$0xf]
    %v497 = vld [vmem:[%s1 + $0xac] sm:$0xf]
    %v498 = vld [vmem:[%s1 + $0xb0] sm:$0xf]
    %v499 = vld [vmem:[%s1 + $0xb4] sm:$0xf]
    %v500 = vld [vmem:[%s1 + $0xb8] sm:$0xf]
    %v501 = vld [vmem:[%s1 + $0xbc] sm:$0xf]
    %v502 = vld [vmem:[%s2 + $0x2] sm:$0x1]
    %v503 = vld [vmem:[%s2 + $0x3] sm:$0x1]
    %v504 = vrot.slane %v466, 6
    %v505 = vrot.slane %v467, 6
    %v506 = vrot.slane %v468, 6
    %v507 = vrot.slane %v469, 6
    %vm508 = vcmp.lt.s32.totalorder %v17, 2
    %v509 = vsel %vm508, %v506, %v507
    %v510 = vsel %vm508, %v505, %v506
    %v511 = vsel %vm508, %v504, %v505
    %v512 = vsel %vm508, %v507, %v504
    %v513 = vsel %vm470, %v512, 0.0
    %v514 = vsel %vm471, %v511, 0.0
    %v515 = vsel %vm472, %v510, 0.0
    %v516 = vsel %vm473, %v509, 0.0
    %v517 = vrot.slane %v466, 2
    %v518 = vrot.slane %v467, 2
    %v519 = vrot.slane %v468, 2
    %v520 = vrot.slane %v469, 2
    %vm521 = vcmp.lt.s32.totalorder %v17, 6
    %v522 = vsel %vm521, %v519, %v520
    %v523 = vsel %vm521, %v518, %v519
    %v524 = vsel %vm521, %v517, %v518
    %v525 = vsel %vm521, %v520, %v517
    %v526 = vsel %vm474, %v524, 0.0
    %v527 = vsel %vm475, %v523, 0.0
    %v528 = vsel %vm476, %v522, 0.0
    %v529 = vsel %vm477, %v525, 0.0
    %534 = vrot.lane.b32.xlu0 %v466, 32
    %v535 = vpop.permute.xlu0 %534
    %536 = vrot.lane.b32.xlu0 %v467, 32
    %v537 = vpop.permute.xlu0 %536
    %538 = vrot.lane.b32.xlu0 %v468, 32
    %v539 = vpop.permute.xlu0 %538
    %540 = vrot.lane.b32.xlu0 %v469, 32
    %v541 = vpop.permute.xlu0 %540
    %550 = vrot.lane.b32.xlu0 %v526, 64
    %v551 = vpop.permute.xlu0 %550
    %552 = vrot.lane.b32.xlu0 %v527, 64
    %v553 = vpop.permute.xlu0 %552
    %554 = vrot.lane.b32.xlu0 %v528, 64
    %v555 = vpop.permute.xlu0 %554
    %556 = vrot.lane.b32.xlu0 %v529, 64
    %v557 = vpop.permute.xlu0 %556
    %v562 = vsel %vm169, %v513, %v535
    %v563 = vsel %vm169, %v514, %v537
    %v564 = vsel %vm169, %v515, %v539
    %v565 = vsel %vm169, %v516, %v541
    %v566 = vsel %vm174, %v562, %v551
    %v567 = vsel %vm174, %v563, %v553
    %v568 = vsel %vm174, %v564, %v555
    %v569 = vsel %vm174, %v565, %v557
    %v570 = vpack.c.bf16 %v567, %v566
    %v571 = vpack.c.bf16 %v569, %v568
    %v572 = vlaneseq
    %v573 = vshrl.u32 %v572, 7
    %v574 = vsub.s32 0, %v573
    %v575 = vrot.slane %v502, %v574
    %v588 = vunpack.c.l.b16 %v478
    %v589 = vunpack.c.l.b16 %v479
    %v590 = vunpack.c.l.b16 %v480
    %v591 = vunpack.c.l.b16 %v481
    %v592 = vunpack.c.l.b16 %v482
    %v593 = vunpack.c.l.b16 %v483
    %v594 = vunpack.c.l.b16 %v484
    %v595 = vunpack.c.l.b16 %v485
    %v596 = vunpack.c.l.b16 %v486
    %v597 = vunpack.c.l.b16 %v487
    %v598 = vunpack.c.l.b16 %v488
    %v599 = vunpack.c.l.b16 %v489
    %v600 = vpack.c.b16 %v589, %v588
    %v601 = vpack.c.b16 %v591, %v590
    %v602 = vpack.c.b16 %v593, %v592
    %v603 = vpack.c.b16 %v595, %v594
    %v604 = vpack.c.b16 %v597, %v596
    %v605 = vpack.c.b16 %v599, %v598
    %v613 = vsel %vm221, %v570, 0
    %v616 = vsel %vm221, %v571, 0
    %618 = vmatprep.subr.bf16.mxu0 0
    %619 = vmatpush1.bf16.msra.mxu0 0
    %620 = vmatprep.subr.bf16.mxu0 0
    %621 = vmatpush1.bf16.msra.mxu0 0
    %622 = vmatprep.subr.bf16.mxu0 0
    %623 = vmatpush1.bf16.msra.mxu0 %v605
    %624 = vmatprep.subr.bf16.mxu0 0
    %625 = vmatpush1.bf16.msra.mxu0 %v604
    %626 = vmatprep.subr.bf16.mxu0 0
    %627 = vmatpush1.bf16.msra.mxu0 %v603
    %628 = vmatprep.subr.bf16.mxu0 0
    %629 = vmatpush1.bf16.msra.mxu0 %v602
    %630 = vmatprep.subr.bf16.mxu0 0
    %631 = vmatpush1.bf16.msra.mxu0 %v601
    %632 = vmatprep.subr.bf16.mxu0 0
    %633 = vmatpush1.bf16.msra.mxu0 %v600
    %634 = vmatprep.subr.bf16.mxu0 0
    %635 = vmatpush2.bf16.msra.mxu0 0
    %636 = vmatprep.subr.bf16.mxu0 0
    %637 = vmatpush2.bf16.msra.mxu0 0
    %638 = vmatprep.subr.bf16.mxu0 0
    %639 = vmatpush2.bf16.msra.mxu0 0
    %640 = vmatprep.subr.bf16.mxu0 0
    %641 = vmatpush2.bf16.msra.mxu0 0
    %642 = vmatprep.subr.bf16.mxu0 0
    %643 = vmatpush2.bf16.msra.mxu0 0
    %644 = vmatprep.subr.bf16.mxu0 0
    %645 = vmatpush2.bf16.msra.mxu0 0
    %646 = vmatprep.subr.bf16.mxu0 0
    %647 = vmatpush2.bf16.msra.mxu0 0
    %648 = vmatprep.subr.bf16.mxu0 0
    %649 = vmatpush2.bf16.msra.mxu0 0
    %650 = vmatprep.mubr.bf16.mxu0 0
    %651 = vmatmul.mubr.bf16.gmra.mxu0 %v613
    %v652 = vpop.f32.mrf.mxu0
    %v653 = vadd.f32 %v575, %v652
    %v654 = vpop.f32.mrf.mxu0
    %v655 = vpop.f32.mrf.mxu0
    %v656 = vadd.f32 %v575, %v655
    %v657 = vpop.f32.mrf.mxu0
    %658 = vmatprep.mubr.bf16.mxu0 0
    %659 = vmatmul.mubr.bf16.gmra.mxu0 %v616
    %v660 = vpop.f32.mrf.mxu0
    %v661 = vadd.f32 %v575, %v660
    %v662 = vpop.f32.mrf.mxu0
    %v663 = vpop.f32.mrf.mxu0
    %v664 = vadd.f32 %v575, %v663
    %v665 = vpop.f32.mrf.mxu0
    %666 = vdwg.mxu0
    %v667 = vmax.f32 %v653, 0.0
    %v668 = vmax.f32 %v656, 0.0
    %v669 = vmax.f32 %v661, 0.0
    %v670 = vmax.f32 %v664, 0.0
    %v671 = vrot.slane %v667, 6
    %v672 = vrot.slane %v668, 6
    %v673 = vrot.slane %v669, 6
    %v674 = vrot.slane %v670, 6
    %v675 = vsel %vm508, %v673, %v674
    %v676 = vsel %vm508, %v672, %v673
    %v677 = vsel %vm508, %v671, %v672
    %v678 = vsel %vm508, %v674, %v671
    %v679 = vsel %vm470, %v678, 0.0
    %v680 = vsel %vm471, %v677, 0.0
    %v681 = vsel %vm472, %v676, 0.0
    %v682 = vsel %vm473, %v675, 0.0
    %v683 = vrot.slane %v667, 2
    %v684 = vrot.slane %v668, 2
    %v685 = vrot.slane %v669, 2
    %v686 = vrot.slane %v670, 2
    %v687 = vsel %vm521, %v685, %v686
    %v688 = vsel %vm521, %v684, %v685
    %v689 = vsel %vm521, %v683, %v684
    %v690 = vsel %vm521, %v686, %v683
    %v691 = vsel %vm474, %v689, 0.0
    %v692 = vsel %vm475, %v688, 0.0
    %v693 = vsel %vm476, %v687, 0.0
    %v694 = vsel %vm477, %v690, 0.0
    %699 = vrot.lane.b32.xlu0 %v667, 32
    %v700 = vpop.permute.xlu0 %699
    %701 = vrot.lane.b32.xlu0 %v668, 32
    %v702 = vpop.permute.xlu0 %701
    %703 = vrot.lane.b32.xlu0 %v669, 32
    %v704 = vpop.permute.xlu0 %703
    %705 = vrot.lane.b32.xlu0 %v670, 32
    %v706 = vpop.permute.xlu0 %705
    %715 = vrot.lane.b32.xlu0 %v691, 64
    %v716 = vpop.permute.xlu0 %715
    %717 = vrot.lane.b32.xlu0 %v692, 64
    %v718 = vpop.permute.xlu0 %717
    %719 = vrot.lane.b32.xlu0 %v693, 64
    %v720 = vpop.permute.xlu0 %719
    %721 = vrot.lane.b32.xlu0 %v694, 64
    %v722 = vpop.permute.xlu0 %721
    %v727 = vsel %vm169, %v679, %v700
    %v728 = vsel %vm169, %v680, %v702
    %v729 = vsel %vm169, %v681, %v704
    %v730 = vsel %vm169, %v682, %v706
    %v731 = vsel %vm174, %v727, %v716
    %v732 = vsel %vm174, %v728, %v718
    %v733 = vsel %vm174, %v729, %v720
    %v734 = vsel %vm174, %v730, %v722
    %v735 = vpack.c.bf16 %v732, %v731
    %v736 = vpack.c.bf16 %v734, %v733
    %v737 = vlaneseq
    %v738 = vshrl.u32 %v737, 7
    %v739 = vsub.s32 0, %v738
    %v740 = vrot.slane %v503, %v739
    %v753 = vunpack.c.l.b16 %v490
    %v754 = vunpack.c.l.b16 %v491
    %v755 = vunpack.c.l.b16 %v492
    %v756 = vunpack.c.l.b16 %v493
    %v757 = vunpack.c.l.b16 %v494
    %v758 = vunpack.c.l.b16 %v495
    %v759 = vunpack.c.l.b16 %v496
    %v760 = vunpack.c.l.b16 %v497
    %v761 = vunpack.c.l.b16 %v498
    %v762 = vunpack.c.l.b16 %v499
    %v763 = vunpack.c.l.b16 %v500
    %v764 = vunpack.c.l.b16 %v501
    %v765 = vpack.c.b16 %v754, %v753
    %v766 = vpack.c.b16 %v756, %v755
    %v767 = vpack.c.b16 %v758, %v757
    %v768 = vpack.c.b16 %v760, %v759
    %v769 = vpack.c.b16 %v762, %v761
    %v770 = vpack.c.b16 %v764, %v763
    %v778 = vsel %vm221, %v735, 0
    %v781 = vsel %vm221, %v736, 0
    %783 = vmatprep.subr.bf16.mxu0 0
    %784 = vmatpush1.bf16.msra.mxu0 0
    %785 = vmatprep.subr.bf16.mxu0 0
    %786 = vmatpush1.bf16.msra.mxu0 0
    %787 = vmatprep.subr.bf16.mxu0 0
    %788 = vmatpush1.bf16.msra.mxu0 %v770
    %789 = vmatprep.subr.bf16.mxu0 0
    %790 = vmatpush1.bf16.msra.mxu0 %v769
    %791 = vmatprep.subr.bf16.mxu0 0
    %792 = vmatpush1.bf16.msra.mxu0 %v768
    %793 = vmatprep.subr.bf16.mxu0 0
    %794 = vmatpush1.bf16.msra.mxu0 %v767
    %795 = vmatprep.subr.bf16.mxu0 0
    %796 = vmatpush1.bf16.msra.mxu0 %v766
    %797 = vmatprep.subr.bf16.mxu0 0
    %798 = vmatpush1.bf16.msra.mxu0 %v765
    %799 = vmatprep.subr.bf16.mxu0 0
    %800 = vmatpush2.bf16.msra.mxu0 0
    %801 = vmatprep.subr.bf16.mxu0 0
    %802 = vmatpush2.bf16.msra.mxu0 0
    %803 = vmatprep.subr.bf16.mxu0 0
    %804 = vmatpush2.bf16.msra.mxu0 0
    %805 = vmatprep.subr.bf16.mxu0 0
    %806 = vmatpush2.bf16.msra.mxu0 0
    %807 = vmatprep.subr.bf16.mxu0 0
    %808 = vmatpush2.bf16.msra.mxu0 0
    %809 = vmatprep.subr.bf16.mxu0 0
    %810 = vmatpush2.bf16.msra.mxu0 0
    %811 = vmatprep.subr.bf16.mxu0 0
    %812 = vmatpush2.bf16.msra.mxu0 0
    %813 = vmatprep.subr.bf16.mxu0 0
    %814 = vmatpush2.bf16.msra.mxu0 0
    %815 = vmatprep.mubr.bf16.mxu0 0
    %816 = vmatmul.mubr.bf16.gmra.mxu0 %v778
    %v817 = vpop.f32.mrf.mxu0
    %v818 = vadd.f32 %v740, %v817
    %v819 = vpop.f32.mrf.mxu0
    %v820 = vpop.f32.mrf.mxu0
    %v821 = vadd.f32 %v740, %v820
    %v822 = vpop.f32.mrf.mxu0
    %823 = vmatprep.mubr.bf16.mxu0 0
    %824 = vmatmul.mubr.bf16.gmra.mxu0 %v781
    %v825 = vpop.f32.mrf.mxu0
    %v826 = vadd.f32 %v740, %v825
    %v827 = vpop.f32.mrf.mxu0
    %v828 = vpop.f32.mrf.mxu0
    %v829 = vadd.f32 %v740, %v828
    %v830 = vpop.f32.mrf.mxu0
    %831 = vdwg.mxu0
    %v832 = vmax.f32 %v818, 0.0
    %v833 = vmax.f32 %v821, 0.0
    %v834 = vmax.f32 %v826, 0.0
    %v835 = vmax.f32 %v829, 0.0
    %840 = vrot.lane.b32.xlu0 %v653, 96
    %v841 = vpop.permute.xlu0 %840
    %842 = vrot.lane.b32.xlu0 %v656, 96
    %v843 = vpop.permute.xlu0 %842
    %844 = vrot.lane.b32.xlu0 %v661, 96
    %v845 = vpop.permute.xlu0 %844
    %846 = vrot.lane.b32.xlu0 %v664, 96
    %v847 = vpop.permute.xlu0 %846
    %v852 = vadd.f32 %v832, %v841
    %v853 = vadd.f32 %v833, %v843
    %v854 = vadd.f32 %v834, %v845
    %v855 = vadd.f32 %v835, %v847
    %v856 = vmax.f32 %v852, 0.0
    %v857 = vmax.f32 %v853, 0.0
    %v858 = vmax.f32 %v854, 0.0
    %v859 = vmax.f32 %v855, 0.0
    %vm860 = vcmp.ge.s32.totalorder %v65, 4
    %vm861 = vcmp.ge.s32.totalorder %v66, 4
    %vm862 = vcmp.ge.s32.totalorder %v67, 4
    %vm863 = vcmp.ge.s32.totalorder %v68, 4
    %vm864 = vcmp.lt.s32.totalorder %v65, 12
    %vm865 = vcmp.lt.s32.totalorder %v66, 12
    %vm866 = vcmp.lt.s32.totalorder %v67, 12
    %vm867 = vcmp.lt.s32.totalorder %v68, 12
    %v868 = vld [vmem:[%s1 + $0xc0] sm:$0xf]
    %v869 = vld [vmem:[%s1 + $0xc4] sm:$0xf]
    %v870 = vld [vmem:[%s1 + $0xc8] sm:$0xf]
    %v871 = vld [vmem:[%s1 + $0xcc] sm:$0xf]
    %v872 = vld [vmem:[%s1 + $0xd0] sm:$0xf]
    %v873 = vld [vmem:[%s1 + $0xd4] sm:$0xf]
    %v874 = vld [vmem:[%s1 + $0xd8] sm:$0xf]
    %v875 = vld [vmem:[%s1 + $0xdc] sm:$0xf]
    %v876 = vld [vmem:[%s1 + $0xe0] sm:$0xf]
    %v877 = vld [vmem:[%s1 + $0xe4] sm:$0xf]
    %v878 = vld [vmem:[%s1 + $0xe8] sm:$0xf]
    %v879 = vld [vmem:[%s1 + $0xec] sm:$0xf]
    %v880 = vld [vmem:[%s1 + $0xf0] sm:$0xf]
    %v881 = vld [vmem:[%s1 + $0xf4] sm:$0xf]
    %v882 = vld [vmem:[%s1 + $0xf8] sm:$0xf]
    %v883 = vld [vmem:[%s1 + $0xfc] sm:$0xf]
    %v884 = vld [vmem:[%s1 + $0x100] sm:$0xf]
    %v885 = vld [vmem:[%s1 + $0x104] sm:$0xf]
    %v886 = vld [vmem:[%s1 + $0x108] sm:$0xf]
    %v887 = vld [vmem:[%s1 + $0x10c] sm:$0xf]
    %v888 = vld [vmem:[%s1 + $0x110] sm:$0xf]
    %v889 = vld [vmem:[%s1 + $0x114] sm:$0xf]
    %v890 = vld [vmem:[%s1 + $0x118] sm:$0xf]
    %v891 = vld [vmem:[%s1 + $0x11c] sm:$0xf]
    %v892 = vld [vmem:[%s2 + $0x4] sm:$0x1]
    %v893 = vld [vmem:[%s2 + $0x5] sm:$0x1]
    %v894 = vrot.slane %v856, 4
    %v895 = vrot.slane %v857, 4
    %v896 = vrot.slane %v858, 4
    %v897 = vrot.slane %v859, 4
    %vm898 = vcmp.lt.s32.totalorder %v17, 4
    %v899 = vsel %vm898, %v896, %v897
    %v900 = vsel %vm898, %v895, %v896
    %v901 = vsel %vm898, %v894, %v895
    %v902 = vsel %vm898, %v897, %v894
    %v903 = vsel %vm860, %v902, 0.0
    %v904 = vsel %vm861, %v901, 0.0
    %v905 = vsel %vm862, %v900, 0.0
    %v906 = vsel %vm863, %v899, 0.0
    %v907 = vsel %vm864, %v901, 0.0
    %v908 = vsel %vm865, %v900, 0.0
    %v909 = vsel %vm866, %v899, 0.0
    %v910 = vsel %vm867, %v902, 0.0
    %915 = vrot.lane.b32.xlu0 %v856, 32
    %v916 = vpop.permute.xlu0 %915
    %917 = vrot.lane.b32.xlu0 %v857, 32
    %v918 = vpop.permute.xlu0 %917
    %919 = vrot.lane.b32.xlu0 %v858, 32
    %v920 = vpop.permute.xlu0 %919
    %921 = vrot.lane.b32.xlu0 %v859, 32
    %v922 = vpop.permute.xlu0 %921
    %931 = vrot.lane.b32.xlu0 %v907, 64
    %v932 = vpop.permute.xlu0 %931
    %933 = vrot.lane.b32.xlu0 %v908, 64
    %v934 = vpop.permute.xlu0 %933
    %935 = vrot.lane.b32.xlu0 %v909, 64
    %v936 = vpop.permute.xlu0 %935
    %937 = vrot.lane.b32.xlu0 %v910, 64
    %v938 = vpop.permute.xlu0 %937
    %v943 = vsel %vm169, %v903, %v916
    %v944 = vsel %vm169, %v904, %v918
    %v945 = vsel %vm169, %v905, %v920
    %v946 = vsel %vm169, %v906, %v922
    %v947 = vsel %vm174, %v943, %v932
    %v948 = vsel %vm174, %v944, %v934
    %v949 = vsel %vm174, %v945, %v936
    %v950 = vsel %vm174, %v946, %v938
    %v951 = vpack.c.bf16 %v948, %v947
    %v952 = vpack.c.bf16 %v950, %v949
    %v953 = vlaneseq
    %v954 = vshrl.u32 %v953, 7
    %v955 = vsub.s32 0, %v954
    %v956 = vrot.slane %v892, %v955
    %v969 = vunpack.c.l.b16 %v868
    %v970 = vunpack.c.l.b16 %v869
    %v971 = vunpack.c.l.b16 %v870
    %v972 = vunpack.c.l.b16 %v871
    %v973 = vunpack.c.l.b16 %v872
    %v974 = vunpack.c.l.b16 %v873
    %v975 = vunpack.c.l.b16 %v874
    %v976 = vunpack.c.l.b16 %v875
    %v977 = vunpack.c.l.b16 %v876
    %v978 = vunpack.c.l.b16 %v877
    %v979 = vunpack.c.l.b16 %v878
    %v980 = vunpack.c.l.b16 %v879
    %v981 = vpack.c.b16 %v970, %v969
    %v982 = vpack.c.b16 %v972, %v971
    %v983 = vpack.c.b16 %v974, %v973
    %v984 = vpack.c.b16 %v976, %v975
    %v985 = vpack.c.b16 %v978, %v977
    %v986 = vpack.c.b16 %v980, %v979
    %v994 = vsel %vm221, %v951, 0
    %v997 = vsel %vm221, %v952, 0
    %999 = vmatprep.subr.bf16.mxu0 0
    %1000 = vmatpush1.bf16.msra.mxu0 0
    %1001 = vmatprep.subr.bf16.mxu0 0
    %1002 = vmatpush1.bf16.msra.mxu0 0
    %1003 = vmatprep.subr.bf16.mxu0 0
    %1004 = vmatpush1.bf16.msra.mxu0 %v986
    %1005 = vmatprep.subr.bf16.mxu0 0
    %1006 = vmatpush1.bf16.msra.mxu0 %v985
    %1007 = vmatprep.subr.bf16.mxu0 0
    %1008 = vmatpush1.bf16.msra.mxu0 %v984
    %1009 = vmatprep.subr.bf16.mxu0 0
    %1010 = vmatpush1.bf16.msra.mxu0 %v983
    %1011 = vmatprep.subr.bf16.mxu0 0
    %1012 = vmatpush1.bf16.msra.mxu0 %v982
    %1013 = vmatprep.subr.bf16.mxu0 0
    %1014 = vmatpush1.bf16.msra.mxu0 %v981
    %1015 = vmatprep.subr.bf16.mxu0 0
    %1016 = vmatpush2.bf16.msra.mxu0 0
    %1017 = vmatprep.subr.bf16.mxu0 0
    %1018 = vmatpush2.bf16.msra.mxu0 0
    %1019 = vmatprep.subr.bf16.mxu0 0
    %1020 = vmatpush2.bf16.msra.mxu0 0
    %1021 = vmatprep.subr.bf16.mxu0 0
    %1022 = vmatpush2.bf16.msra.mxu0 0
    %1023 = vmatprep.subr.bf16.mxu0 0
    %1024 = vmatpush2.bf16.msra.mxu0 0
    %1025 = vmatprep.subr.bf16.mxu0 0
    %1026 = vmatpush2.bf16.msra.mxu0 0
    %1027 = vmatprep.subr.bf16.mxu0 0
    %1028 = vmatpush2.bf16.msra.mxu0 0
    %1029 = vmatprep.subr.bf16.mxu0 0
    %1030 = vmatpush2.bf16.msra.mxu0 0
    %1031 = vmatprep.mubr.bf16.mxu0 0
    %1032 = vmatmul.mubr.bf16.gmra.mxu0 %v994
    %v1033 = vpop.f32.mrf.mxu0
    %v1034 = vadd.f32 %v956, %v1033
    %v1035 = vpop.f32.mrf.mxu0
    %v1036 = vpop.f32.mrf.mxu0
    %v1037 = vadd.f32 %v956, %v1036
    %v1038 = vpop.f32.mrf.mxu0
    %1039 = vmatprep.mubr.bf16.mxu0 0
    %1040 = vmatmul.mubr.bf16.gmra.mxu0 %v997
    %v1041 = vpop.f32.mrf.mxu0
    %v1042 = vadd.f32 %v956, %v1041
    %v1043 = vpop.f32.mrf.mxu0
    %v1044 = vpop.f32.mrf.mxu0
    %v1045 = vadd.f32 %v956, %v1044
    %v1046 = vpop.f32.mrf.mxu0
    %1047 = vdwg.mxu0
    %v1048 = vmax.f32 %v1034, 0.0
    %v1049 = vmax.f32 %v1037, 0.0
    %v1050 = vmax.f32 %v1042, 0.0
    %v1051 = vmax.f32 %v1045, 0.0
    %v1052 = vrot.slane %v1048, 4
    %v1053 = vrot.slane %v1049, 4
    %v1054 = vrot.slane %v1050, 4
    %v1055 = vrot.slane %v1051, 4
    %v1056 = vsel %vm898, %v1054, %v1055
    %v1057 = vsel %vm898, %v1053, %v1054
    %v1058 = vsel %vm898, %v1052, %v1053
    %v1059 = vsel %vm898, %v1055, %v1052
    %v1060 = vsel %vm860, %v1059, 0.0
    %v1061 = vsel %vm861, %v1058, 0.0
    %v1062 = vsel %vm862, %v1057, 0.0
    %v1063 = vsel %vm863, %v1056, 0.0
    %v1064 = vsel %vm864, %v1058, 0.0
    %v1065 = vsel %vm865, %v1057, 0.0
    %v1066 = vsel %vm866, %v1056, 0.0
    %v1067 = vsel %vm867, %v1059, 0.0
    %1072 = vrot.lane.b32.xlu0 %v1048, 32
    %v1073 = vpop.permute.xlu0 %1072
    %1074 = vrot.lane.b32.xlu0 %v1049, 32
    %v1075 = vpop.permute.xlu0 %1074
    %1076 = vrot.lane.b32.xlu0 %v1050, 32
    %v1077 = vpop.permute.xlu0 %1076
    %1078 = vrot.lane.b32.xlu0 %v1051, 32
    %v1079 = vpop.permute.xlu0 %1078
    %1088 = vrot.lane.b32.xlu0 %v1064, 64
    %v1089 = vpop.permute.xlu0 %1088
    %1090 = vrot.lane.b32.xlu0 %v1065, 64
    %v1091 = vpop.permute.xlu0 %1090
    %1092 = vrot.lane.b32.xlu0 %v1066, 64
    %v1093 = vpop.permute.xlu0 %1092
    %1094 = vrot.lane.b32.xlu0 %v1067, 64
    %v1095 = vpop.permute.xlu0 %1094
    %v1100 = vsel %vm169, %v1060, %v1073
    %v1101 = vsel %vm169, %v1061, %v1075
    %v1102 = vsel %vm169, %v1062, %v1077
    %v1103 = vsel %vm169, %v1063, %v1079
    %v1104 = vsel %vm174, %v1100, %v1089
    %v1105 = vsel %vm174, %v1101, %v1091
    %v1106 = vsel %vm174, %v1102, %v1093
    %v1107 = vsel %vm174, %v1103, %v1095
    %v1108 = vpack.c.bf16 %v1105, %v1104
    %v1109 = vpack.c.bf16 %v1107, %v1106
    %v1110 = vlaneseq
    %v1111 = vshrl.u32 %v1110, 7
    %v1112 = vsub.s32 0, %v1111
    %v1113 = vrot.slane %v893, %v1112
    %v1126 = vunpack.c.l.b16 %v880
    %v1127 = vunpack.c.l.b16 %v881
    %v1128 = vunpack.c.l.b16 %v882
    %v1129 = vunpack.c.l.b16 %v883
    %v1130 = vunpack.c.l.b16 %v884
    %v1131 = vunpack.c.l.b16 %v885
    %v1132 = vunpack.c.l.b16 %v886
    %v1133 = vunpack.c.l.b16 %v887
    %v1134 = vunpack.c.l.b16 %v888
    %v1135 = vunpack.c.l.b16 %v889
    %v1136 = vunpack.c.l.b16 %v890
    %v1137 = vunpack.c.l.b16 %v891
    %v1138 = vpack.c.b16 %v1127, %v1126
    %v1139 = vpack.c.b16 %v1129, %v1128
    %v1140 = vpack.c.b16 %v1131, %v1130
    %v1141 = vpack.c.b16 %v1133, %v1132
    %v1142 = vpack.c.b16 %v1135, %v1134
    %v1143 = vpack.c.b16 %v1137, %v1136
    %v1151 = vsel %vm221, %v1108, 0
    %v1154 = vsel %vm221, %v1109, 0
    %1156 = vmatprep.subr.bf16.mxu0 0
    %1157 = vmatpush1.bf16.msra.mxu0 0
    %1158 = vmatprep.subr.bf16.mxu0 0
    %1159 = vmatpush1.bf16.msra.mxu0 0
    %1160 = vmatprep.subr.bf16.mxu0 0
    %1161 = vmatpush1.bf16.msra.mxu0 %v1143
    %1162 = vmatprep.subr.bf16.mxu0 0
    %1163 = vmatpush1.bf16.msra.mxu0 %v1142
    %1164 = vmatprep.subr.bf16.mxu0 0
    %1165 = vmatpush1.bf16.msra.mxu0 %v1141
    %1166 = vmatprep.subr.bf16.mxu0 0
    %1167 = vmatpush1.bf16.msra.mxu0 %v1140
    %1168 = vmatprep.subr.bf16.mxu0 0
    %1169 = vmatpush1.bf16.msra.mxu0 %v1139
    %1170 = vmatprep.subr.bf16.mxu0 0
    %1171 = vmatpush1.bf16.msra.mxu0 %v1138
    %1172 = vmatprep.subr.bf16.mxu0 0
    %1173 = vmatpush2.bf16.msra.mxu0 0
    %1174 = vmatprep.subr.bf16.mxu0 0
    %1175 = vmatpush2.bf16.msra.mxu0 0
    %1176 = vmatprep.subr.bf16.mxu0 0
    %1177 = vmatpush2.bf16.msra.mxu0 0
    %1178 = vmatprep.subr.bf16.mxu0 0
    %1179 = vmatpush2.bf16.msra.mxu0 0
    %1180 = vmatprep.subr.bf16.mxu0 0
    %1181 = vmatpush2.bf16.msra.mxu0 0
    %1182 = vmatprep.subr.bf16.mxu0 0
    %1183 = vmatpush2.bf16.msra.mxu0 0
    %1184 = vmatprep.subr.bf16.mxu0 0
    %1185 = vmatpush2.bf16.msra.mxu0 0
    %1186 = vmatprep.subr.bf16.mxu0 0
    %1187 = vmatpush2.bf16.msra.mxu0 0
    %1188 = vmatprep.mubr.bf16.mxu0 0
    %1189 = vmatmul.mubr.bf16.gmra.mxu0 %v1151
    %v1190 = vpop.f32.mrf.mxu0
    %v1191 = vadd.f32 %v1113, %v1190
    %v1192 = vpop.f32.mrf.mxu0
    %v1193 = vpop.f32.mrf.mxu0
    %v1194 = vadd.f32 %v1113, %v1193
    %v1195 = vpop.f32.mrf.mxu0
    %1196 = vmatprep.mubr.bf16.mxu0 0
    %1197 = vmatmul.mubr.bf16.gmra.mxu0 %v1154
    %v1198 = vpop.f32.mrf.mxu0
    %v1199 = vadd.f32 %v1113, %v1198
    %v1200 = vpop.f32.mrf.mxu0
    %v1201 = vpop.f32.mrf.mxu0
    %v1202 = vadd.f32 %v1113, %v1201
    %v1203 = vpop.f32.mrf.mxu0
    %1204 = vdwg.mxu0
    %v1205 = vmax.f32 %v1191, 0.0
    %v1206 = vmax.f32 %v1194, 0.0
    %v1207 = vmax.f32 %v1199, 0.0
    %v1208 = vmax.f32 %v1202, 0.0
    %1213 = vrot.lane.b32.xlu0 %v1034, 96
    %v1214 = vpop.permute.xlu0 %1213
    %1215 = vrot.lane.b32.xlu0 %v1037, 96
    %v1216 = vpop.permute.xlu0 %1215
    %1217 = vrot.lane.b32.xlu0 %v1042, 96
    %v1218 = vpop.permute.xlu0 %1217
    %1219 = vrot.lane.b32.xlu0 %v1045, 96
    %v1220 = vpop.permute.xlu0 %1219
    %v1225 = vadd.f32 %v1205, %v1214
    %v1226 = vadd.f32 %v1206, %v1216
    %v1227 = vadd.f32 %v1207, %v1218
    %v1228 = vadd.f32 %v1208, %v1220
    %v1229 = vmax.f32 %v1225, 0.0
    %v1230 = vmax.f32 %v1226, 0.0
    %v1231 = vmax.f32 %v1227, 0.0
    %v1232 = vmax.f32 %v1228, 0.0
    %v1233 = vpack.c.bf16 %v1230, %v1229
    %v1234 = vpack.c.bf16 %v1232, %v1231
    %v1237 = vunpack.c.l.b16 %v1233
    %v1238 = vunpack.c.h.b16 %v1233
    %v1239 = vunpack.c.l.b16 %v1234
    %v1240 = vunpack.c.h.b16 %v1234
    %v1241 = vpack.c.b16 %v1237, %v1237
    %v1242 = vpack.c.b16 %v1238, %v1238
    %v1243 = vpack.c.b16 %v1239, %v1239
    %v1244 = vpack.c.b16 %v1240, %v1240
    %vm1249 = vcmask 257024
    %1250 = vst.msk [vmem:[#allocation2] sm:$0xf] %vm1249, %v1241
    %1251 = vst.msk [vmem:[#allocation2 + $0x4] sm:$0xf] %vm1249, %v1242
    %1252 = vst.msk [vmem:[#allocation2 + $0x8] sm:$0xf] %vm1249, %v1243
    %1253 = vst.msk [vmem:[#allocation2 + $0xc] sm:$0xf] %vm1249, %v1244
    // Predicated region
    $region14: #{tpu_custom_call.1} parent=1 // pred_check
      _
    $region15: #{tpu_custom_call.1} parent=1 // pred_check_branch
      %1255 = sbr.rel (0) target = $region17
    $region16: #{tpu_custom_call.1} parent=1 // pred_region
      %s1257 = ssub.s32 256, 256
      %1258 = vsyncadd [#allocation3], %s1257
      %s1259 = sshll.u32 [#allocation2], 4
      %s1260 = int_to_ptr.vmem [resolvable:$true] %s1259
      %1265 = dma.vmem_to_hbm [thread:$0]  %s1260, 256, %s3, [#allocation3], 64, 64, 4
    $region17: #{tpu_custom_call.1} parent=1 // pred_fallthru
      _
    // Predicated region
    $region18: #{tpu_custom_call.1} parent=1 // pred_check
      _
    $region19: #{tpu_custom_call.1} parent=1 // pred_check_branch
      %1267 = sbr.rel (0) target = $region21
    $region20: #{tpu_custom_call.1} parent=1 // pred_region
      %1268 = dma.done [#allocation3], 256
    $region21: #{tpu_custom_call.1} parent=1 // pred_fallthru
      _
    %1269 = vsyncpa [#allocation3], 1

</llo_original>
